<compile_context>
chip_gen: v5e
topology: v5e:2x2
jax: 0.10.0
libtpu: 0.0.40
codegen_flags: <defaults>
</compile_context>

<pallas_src>
import functools

import jax
import jax.numpy as jnp
from jax.experimental import pallas as pl
from jax.experimental.pallas import tpu as pltpu

LEAKY_SLOPE = 0.01        # torch.nn.functional.leaky_relu default negative_slope
OUT_DIM = 2               # final projection width
OUT_PAD = 128             # last dot is done lane-dense in VMEM; only 2 lanes are stored
DEFAULT_MAX_TILE_M = 512  # rows per grid step (multiple of 8)


def _round_up(n, m):
    return ((n + m - 1) // m) * m


def _leaky_relu(x):
    return jnp.where(x >= 0, x, LEAKY_SLOPE * x)


def graphing_model_kernel(x_ref, w1_ref, b1_ref, w2_ref, b2_ref, w3_ref, b3_ref, o_ref):
    # x_ref : (TM, G)         w1_ref: (G, H1)        b1_ref: (1, H1)
    # w2_ref: (H1, H2)        b2_ref: (1, H2)
    # w3_ref: (H2, OUT_PAD)   b3_ref: (1, OUT_PAD)   (gamma already folded in)
    # o_ref : (TM, OUT_DIM)
    h = jnp.dot(x_ref[...], w1_ref[...], preferred_element_type=jnp.float32)
    h = _leaky_relu(h + b1_ref[...])
    h = jnp.dot(h, w2_ref[...], preferred_element_type=jnp.float32)
    h = _leaky_relu(h + b2_ref[...])
    y = jnp.dot(h, w3_ref[...], preferred_element_type=jnp.float32) + b3_ref[...]
    # Only the first OUT_DIM lanes are meaningful; store the narrow block.
    o_ref[...] = y[:, :OUT_DIM].astype(o_ref.dtype)


@functools.partial(jax.jit, static_argnames=("tile_m", "input_dtype"))
def graphing_model_forward(x, params, tile_m=None, input_dtype=jnp.float32):
    """x: (B, genome_size) -> (B, 2) float32, matching GraphingModel.forward."""
    w1, b1, w2, b2, w3, b3, gamma = (
        params["w1"], params["b1"], params["w2"], params["b2"],
        params["w3"], params["b3"], params["gamma"],
    )
    B, G = x.shape
    H1 = w1.shape[1]
    H2 = w2.shape[1]

    # ---- choose / validate the batch tile ------------------------------------
    if tile_m is None:
        tile_m = min(DEFAULT_MAX_TILE_M, _round_up(B, 8))
    if tile_m % 8 != 0:
        raise ValueError(f"tile_m must be a multiple of 8, got {tile_m}")

    # ---- tail handling: pad batch up to a multiple of tile_m -----------------
    B_pad = _round_up(B, tile_m)
    if B_pad != B:
        x = jnp.pad(x, ((0, B_pad - B), (0, 0)))

    # ---- dominant HBM read stream (x, and w1 to keep the first dot uniform) --
    x_in = x.astype(input_dtype)
    w1_in = w1.astype(input_dtype)

    # ---- fold gamma into the last layer; keep its dot lane-dense in VMEM -----
    w3_eff = jnp.zeros((H2, OUT_PAD), jnp.float32).at[:, :OUT_DIM].set(
        (w3 * gamma).astype(jnp.float32))
    b3_eff = jnp.zeros((1, OUT_PAD), jnp.float32).at[:, :OUT_DIM].set(
        (b3 * gamma).reshape(1, OUT_DIM).astype(jnp.float32))

    b1r = b1.reshape(1, H1).astype(jnp.float32)
    b2r = b2.reshape(1, H2).astype(jnp.float32)
    w2f = w2.astype(jnp.float32)

    grid = (B_pad // tile_m,)

    out = pl.pallas_call(
        graphing_model_kernel,
        out_shape=jax.ShapeDtypeStruct((B_pad, OUT_DIM), jnp.float32),
        grid_spec=pltpu.PrefetchScalarGridSpec(
            num_scalar_prefetch=0,
            grid=grid,
            in_specs=[
                pl.BlockSpec((tile_m, G), lambda i: (i, 0)),     # x tile (only per-step DMA)
                pl.BlockSpec((G, H1), lambda i: (0, 0)),         # w1
                pl.BlockSpec((1, H1), lambda i: (0, 0)),         # b1
                pl.BlockSpec((H1, H2), lambda i: (0, 0)),        # w2
                pl.BlockSpec((1, H2), lambda i: (0, 0)),         # b2
                pl.BlockSpec((H2, OUT_PAD), lambda i: (0, 0)),   # w3 * gamma (lane-padded)
                pl.BlockSpec((1, OUT_PAD), lambda i: (0, 0)),    # b3 * gamma (lane-padded)
            ],
            out_specs=pl.BlockSpec((tile_m, OUT_DIM), lambda i: (i, 0)),
        ),
        compiler_params=pltpu.CompilerParams(
            dimension_semantics=("parallel",)),
    )(x_in, w1_in, b1r, w2f, b2r, w3_eff, b3_eff)

    if B_pad != B:
        out = out[:B]
    return out


def init_params(key, genome_size, h1, h2):
    """Deterministic init mirroring nn.Linear shapes.
    PyTorch stores weight as (out, in); we store the transpose (in, out)."""
    ks = jax.random.split(key, 6)

    def linear(kw, kb, fan_in, fan_out):
        bound = 1.0 / jnp.sqrt(fan_in)
        w = jax.random.uniform(kw, (fan_in, fan_out), jnp.float32, -bound, bound)
        b = jax.random.uniform(kb, (fan_out,), jnp.float32, -bound, bound)
        return w, b

    w1, b1 = linear(ks[0], ks[1], genome_size, h1)
    w2, b2 = linear(ks[2], ks[3], h1, h2)
    w3, b3 = linear(ks[4], ks[5], h2, 2)
    gamma = jnp.array(1.0, jnp.float32)
    return dict(w1=w1, b1=b1, w2=w2, b2=b2, w3=w3, b3=b3, gamma=gamma)


def reference_forward(x, p):
    h = x @ p["w1"] + p["b1"]
    h = jnp.where(h >= 0, h, LEAKY_SLOPE * h)
    h = h @ p["w2"] + p["b2"]
    h = jnp.where(h >= 0, h, LEAKY_SLOPE * h)
    y = h @ p["w3"] + p["b3"]
    return y * p["gamma"]


# TODO(synk): calc_gamma / save / load are training-loop & I/O utilities (not part of
# the forward pass) and are intentionally not translated to Pallas.

if __name__ == "__main__":
    key = jax.random.PRNGKey(0)
    k_param, k_x = jax.random.split(key)

    genome_size, h1, h2 = 64, 32, 32
    batch = 20  # deliberately NOT a multiple of 8 to exercise the tail-padding path

    params = init_params(k_param, genome_size, h1, h2)
    x = jax.random.normal(k_x, (batch, genome_size), jnp.float32)
    ref = reference_forward(x, params)

    # 1) f32, auto tile (single grid step for this tiny batch)
    out = jax.block_until_ready(graphing_model_forward(x, params))
    assert out.shape == (batch, 2)
    assert jnp.allclose(out, ref, atol=1e-4, rtol=1e-4), "f32 auto-tile mismatch"

    # 2) f32, explicit small tile -> multi-step grid + padded tail
    out_tiled = jax.block_until_ready(graphing_model_forward(x, params, tile_m=8))
    assert jnp.allclose(out_tiled, ref, atol=1e-4, rtol=1e-4), "f32 tiled mismatch"

    # 3) bf16 input/w1 stream (halves the dominant HBM read), f32 accumulation
    out_bf16 = jax.block_until_ready(
        graphing_model_forward(x, params, input_dtype=jnp.bfloat16))
    assert jnp.allclose(out_bf16, ref, atol=5e-2, rtol=5e-2), "bf16 mismatch"

    print("KERNEL_OK")
</pallas_src>

<mosaic_0001>
module attributes {stable_mosaic.version = 11 : i64} {
  func.func @graphing_model_kernel(%arg0: i32, %arg1: memref<24x64xf32, #tpu.memory_space<vmem>>, %arg2: memref<64x32xf32, #tpu.memory_space<vmem>>, %arg3: memref<1x32xf32, #tpu.memory_space<vmem>>, %arg4: memref<32x32xf32, #tpu.memory_space<vmem>>, %arg5: memref<1x32xf32, #tpu.memory_space<vmem>>, %arg6: memref<32x128xf32, #tpu.memory_space<vmem>>, %arg7: memref<1x128xf32, #tpu.memory_space<vmem>>, %arg8: memref<24x2xf32, #tpu.memory_space<vmem>>) attributes {dimension_semantics = [#tpu.dimension_semantics<parallel>], iteration_bounds = array<i64: 1>, scalar_prefetch = 0 : i64, scratch_operands = 0 : i64, tpu.core_type = #tpu.core_type<tc>, window_params = [{transform_indices = @transform_0, window_bounds = array<i64: 24, 64>}, {pipeline_mode = #tpu.pipeline_mode<synchronous>, transform_indices = @transform_1, window_bounds = array<i64: 64, 32>}, {pipeline_mode = #tpu.pipeline_mode<synchronous>, transform_indices = @transform_2, window_bounds = array<i64: 1, 32>}, {pipeline_mode = #tpu.pipeline_mode<synchronous>, transform_indices = @transform_3, window_bounds = array<i64: 32, 32>}, {pipeline_mode = #tpu.pipeline_mode<synchronous>, transform_indices = @transform_4, window_bounds = array<i64: 1, 32>}, {pipeline_mode = #tpu.pipeline_mode<synchronous>, transform_indices = @transform_5, window_bounds = array<i64: 32, 128>}, {pipeline_mode = #tpu.pipeline_mode<synchronous>, transform_indices = @transform_6, window_bounds = array<i64: 1, 128>}, {transform_indices = @transform_7, window_bounds = array<i64: 24, 2>}]} {
    %c0 = arith.constant 0 : index
    %c0_0 = arith.constant 0 : index
    %0 = vector.load %arg1[%c0, %c0_0] : memref<24x64xf32, #tpu.memory_space<vmem>>, vector<24x64xf32>
    %c0_1 = arith.constant 0 : index
    %c0_2 = arith.constant 0 : index
    %1 = vector.load %arg2[%c0_1, %c0_2] : memref<64x32xf32, #tpu.memory_space<vmem>>, vector<64x32xf32>
    %cst = arith.constant dense<0.000000e+00> : vector<24x32xf32>
    %2 = tpu.matmul %0, %1, %cst {dimension_numbers = #tpu.dot_dimension_numbers<[1], [0], [0], [1], [0, 0, 1, 1], [], []>} : vector<24x64xf32>, vector<64x32xf32>, vector<24x32xf32> -> vector<24x32xf32>
    %c0_3 = arith.constant 0 : index
    %c0_4 = arith.constant 0 : index
    %3 = vector.load %arg3[%c0_3, %c0_4] : memref<1x32xf32, #tpu.memory_space<vmem>>, vector<1x32xf32>
    %4 = vector.broadcast %3 : vector<1x32xf32> to vector<24x32xf32>
    %5 = arith.addf %2, %4 : vector<24x32xf32>
    %cst_5 = arith.constant 0.000000e+00 : f32
    %6 = vector.broadcast %cst_5 : f32 to vector<24x32xf32>
    %7 = arith.cmpf oge, %5, %6 : vector<24x32xf32>
    %cst_6 = arith.constant 0.00999999977 : f32
    %8 = vector.broadcast %cst_6 : f32 to vector<24x32xf32>
    %9 = arith.mulf %8, %5 : vector<24x32xf32>
    %10 = arith.select %7, %5, %9 : vector<24x32xi1>, vector<24x32xf32>
    %c0_7 = arith.constant 0 : index
    %c0_8 = arith.constant 0 : index
    %11 = vector.load %arg4[%c0_7, %c0_8] : memref<32x32xf32, #tpu.memory_space<vmem>>, vector<32x32xf32>
    %cst_9 = arith.constant dense<0.000000e+00> : vector<24x32xf32>
    %12 = tpu.matmul %10, %11, %cst_9 {dimension_numbers = #tpu.dot_dimension_numbers<[1], [0], [0], [1], [0, 0, 1, 1], [], []>} : vector<24x32xf32>, vector<32x32xf32>, vector<24x32xf32> -> vector<24x32xf32>
    %c0_10 = arith.constant 0 : index
    %c0_11 = arith.constant 0 : index
    %13 = vector.load %arg5[%c0_10, %c0_11] : memref<1x32xf32, #tpu.memory_space<vmem>>, vector<1x32xf32>
    %14 = vector.broadcast %13 : vector<1x32xf32> to vector<24x32xf32>
    %15 = arith.addf %12, %14 : vector<24x32xf32>
    %cst_12 = arith.constant 0.000000e+00 : f32
    %16 = vector.broadcast %cst_12 : f32 to vector<24x32xf32>
    %17 = arith.cmpf oge, %15, %16 : vector<24x32xf32>
    %cst_13 = arith.constant 0.00999999977 : f32
    %18 = vector.broadcast %cst_13 : f32 to vector<24x32xf32>
    %19 = arith.mulf %18, %15 : vector<24x32xf32>
    %20 = arith.select %17, %15, %19 : vector<24x32xi1>, vector<24x32xf32>
    %c0_14 = arith.constant 0 : index
    %c0_15 = arith.constant 0 : index
    %21 = vector.load %arg6[%c0_14, %c0_15] : memref<32x128xf32, #tpu.memory_space<vmem>>, vector<32x128xf32>
    %cst_16 = arith.constant dense<0.000000e+00> : vector<24x128xf32>
    %22 = tpu.matmul %20, %21, %cst_16 {dimension_numbers = #tpu.dot_dimension_numbers<[1], [0], [0], [1], [0, 0, 1, 1], [], []>} : vector<24x32xf32>, vector<32x128xf32>, vector<24x128xf32> -> vector<24x128xf32>
    %c0_17 = arith.constant 0 : index
    %c0_18 = arith.constant 0 : index
    %23 = vector.load %arg7[%c0_17, %c0_18] : memref<1x128xf32, #tpu.memory_space<vmem>>, vector<1x128xf32>
    %24 = vector.broadcast %23 : vector<1x128xf32> to vector<24x128xf32>
    %25 = arith.addf %22, %24 : vector<24x128xf32>
    %26 = vector.extract_strided_slice %25 {offsets = [0, 0], sizes = [24, 2], strides = [1, 1]} : vector<24x128xf32> to vector<24x2xf32>
    %c0_19 = arith.constant 0 : index
    %c0_20 = arith.constant 0 : index
    %27 = vector.load %arg8[%c0_19, %c0_20] : memref<24x2xf32, #tpu.memory_space<vmem>>, vector<24x2xf32>
    tpu.vector_store %arg8[%c0_19, %c0_20], %26 {strides = array<i32>} : memref<24x2xf32, #tpu.memory_space<vmem>>, vector<24x2xf32>,
    return
  }
  func.func @transform_0(%arg0: i32) -> (i32, i32) {
    %c0_i32 = arith.constant 0 : i32
    %c0_i32_0 = arith.constant 0 : i32
    return %arg0, %c0_i32 : i32, i32
  }
  func.func @transform_1(%arg0: i32) -> (i32, i32) {
    %c0_i32 = arith.constant 0 : i32
    %c0_i32_0 = arith.constant 0 : i32
    %c0_i32_1 = arith.constant 0 : i32
    return %c0_i32, %c0_i32_0 : i32, i32
  }
  func.func @transform_2(%arg0: i32) -> (i32, i32) {
    %c0_i32 = arith.constant 0 : i32
    %c0_i32_0 = arith.constant 0 : i32
    %c0_i32_1 = arith.constant 0 : i32
    return %c0_i32, %c0_i32_0 : i32, i32
  }
  func.func @transform_3(%arg0: i32) -> (i32, i32) {
    %c0_i32 = arith.constant 0 : i32
    %c0_i32_0 = arith.constant 0 : i32
    %c0_i32_1 = arith.constant 0 : i32
    return %c0_i32, %c0_i32_0 : i32, i32
  }
  func.func @transform_4(%arg0: i32) -> (i32, i32) {
    %c0_i32 = arith.constant 0 : i32
    %c0_i32_0 = arith.constant 0 : i32
    %c0_i32_1 = arith.constant 0 : i32
    return %c0_i32, %c0_i32_0 : i32, i32
  }
  func.func @transform_5(%arg0: i32) -> (i32, i32) {
    %c0_i32 = arith.constant 0 : i32
    %c0_i32_0 = arith.constant 0 : i32
    %c0_i32_1 = arith.constant 0 : i32
    return %c0_i32, %c0_i32_0 : i32, i32
  }
  func.func @transform_6(%arg0: i32) -> (i32, i32) {
    %c0_i32 = arith.constant 0 : i32
    %c0_i32_0 = arith.constant 0 : i32
    %c0_i32_1 = arith.constant 0 : i32
    return %c0_i32, %c0_i32_0 : i32, i32
  }
  func.func @transform_7(%arg0: i32) -> (i32, i32) {
    %c0_i32 = arith.constant 0 : i32
    %c0_i32_0 = arith.constant 0 : i32
    return %arg0, %c0_i32 : i32, i32
  }
}

</mosaic_0001>

<llo_original>
// kernel: graphing_model_forward.1
$region0: #{graphing_model_forward.1}
  #allocation0 [shape = 'u32[]', space=smem, size = 0x4, offset = 0x4, fixed_abs, tag = 'smem constant byte address 0x4 - core index']
  #allocation1 [shape = 'u32[72,128]{1,0:T(1,128)}', space=vmem, size = 0x9000, scoped, tag = 'internal scratch']
  %s0 = inlined_call_operand.vmem [shape: f32[24,64], index: 0, kind: input, shape index: {}]
  %s1 = inlined_call_operand.vmem [shape: f32[64,32], index: 1, kind: input, shape index: {}]
  %s2 = inlined_call_operand.vmem [shape: f32[1,32], index: 2, kind: input, shape index: {}]
  %s3 = inlined_call_operand.vmem [shape: f32[32,32], index: 3, kind: input, shape index: {}]
  %s4 = inlined_call_operand.vmem [shape: f32[1,32], index: 4, kind: input, shape index: {}]
  %s5 = inlined_call_operand.vmem [shape: f32[32,128], index: 5, kind: input, shape index: {}]
  %s6 = inlined_call_operand.vmem [shape: f32[1,128], index: 6, kind: input, shape index: {}]
  %s7 = inlined_call_operand.vmem [shape: f32[24,2], index: 7, kind: output, shape index: {}]
  %s8 = sld [smem:[#allocation0]]
  $region38: #{graphing_model_forward.1} parent=0
    _
  %s10 = ssub.s32 1, %s8
  %s11 = scalar_select 0, %s10, %s8
  // Predicated region
  $region2: #{graphing_model_forward.1} parent=0 // pred_check
    _
  $region3: #{graphing_model_forward.1} parent=0 // pred_check_branch
    %13 = sbr.rel (0) target = $region5
  $region4: #{graphing_model_forward.1} parent=0 // pred_region
    _
  $region5: #{graphing_model_forward.1} parent=0 // pred_fallthru
    _
  // Predicated region
  $region6: #{graphing_model_forward.1} parent=0 // pred_check
    _
  $region7: #{graphing_model_forward.1} parent=0 // pred_check_branch
    %15 = sbr.rel (0) target = $region9
  $region8: #{graphing_model_forward.1} parent=0 // pred_region
    _
  $region9: #{graphing_model_forward.1} parent=0 // pred_fallthru
    _
  // Predicated region
  $region10: #{graphing_model_forward.1} parent=0 // pred_check
    _
  $region11: #{graphing_model_forward.1} parent=0 // pred_check_branch
    %17 = sbr.rel (0) target = $region13
  $region12: #{graphing_model_forward.1} parent=0 // pred_region
    _
  $region13: #{graphing_model_forward.1} parent=0 // pred_fallthru
    _
  // Predicated region
  $region14: #{graphing_model_forward.1} parent=0 // pred_check
    _
  $region15: #{graphing_model_forward.1} parent=0 // pred_check_branch
    %19 = sbr.rel (0) target = $region17
  $region16: #{graphing_model_forward.1} parent=0 // pred_region
    _
  $region17: #{graphing_model_forward.1} parent=0 // pred_fallthru
    _
  // Predicated region
  $region18: #{graphing_model_forward.1} parent=0 // pred_check
    _
  $region19: #{graphing_model_forward.1} parent=0 // pred_check_branch
    %21 = sbr.rel (0) target = $region21
  $region20: #{graphing_model_forward.1} parent=0 // pred_region
    _
  $region21: #{graphing_model_forward.1} parent=0 // pred_fallthru
    _
  // Predicated region
  $region22: #{graphing_model_forward.1} parent=0 // pred_check
    _
  $region23: #{graphing_model_forward.1} parent=0 // pred_check_branch
    %23 = sbr.rel (0) target = $region25
  $region24: #{graphing_model_forward.1} parent=0 // pred_region
    _
  $region25: #{graphing_model_forward.1} parent=0 // pred_fallthru
    _
  // Predicated region
  $region26: #{graphing_model_forward.1} parent=0 // pred_check
    _
  $region27: #{graphing_model_forward.1} parent=0 // pred_check_branch
    %25 = sbr.rel (0) target = $region29
  $region28: #{graphing_model_forward.1} parent=0 // pred_region
    _
  $region29: #{graphing_model_forward.1} parent=0 // pred_fallthru
    _
  %v26 = vld [vmem:[%s0] sm:$0xff]
  %v27 = vld [vmem:[%s0 + $0x8] sm:$0xff]
  %v28 = vld [vmem:[%s0 + $0x10] sm:$0xff]
  %v29 = vld [vmem:[%s1] sm:$0xff]
  %v30 = vld [vmem:[%s1 + $0x8] sm:$0xff]
  %v31 = vld [vmem:[%s1 + $0x10] sm:$0xff]
  %v32 = vld [vmem:[%s1 + $0x18] sm:$0xff]
  %v33 = vld [vmem:[%s1 + $0x20] sm:$0xff]
  %v34 = vld [vmem:[%s1 + $0x28] sm:$0xff]
  %v35 = vld [vmem:[%s1 + $0x30] sm:$0xff]
  %v36 = vld [vmem:[%s1 + $0x38] sm:$0xff]
  %v37 = vld [vmem:[%s2] sm:$0x1]
  %v39 = vperm.slane %v37, 0
  %vm41 = vcmask 523264
  %v43 = vsel %vm41, %v26, 0
  %v46 = vsel %vm41, %v27, 0
  %v49 = vsel %vm41, %v28, 0
  %51 = vmatpush.msra.mxu0 0.0
  %52 = vmatpush.msra.mxu0 0.0
  %53 = vmatpush.msra.mxu0 0.0
  %54 = vmatpush.msra.mxu0 0.0
  %55 = vmatpush.msra.mxu0 0.0
  %56 = vmatpush.msra.mxu0 0.0
  %57 = vmatpush.msra.mxu0 0.0
  %58 = vmatpush.msra.mxu0 0.0
  %59 = vmatpush.msra.mxu0 %v36
  %60 = vmatpush.msra.mxu0 %v35
  %61 = vmatpush.msra.mxu0 %v34
  %62 = vmatpush.msra.mxu0 %v33
  %63 = vmatpush.msra.mxu0 %v32
  %64 = vmatpush.msra.mxu0 %v31
  %65 = vmatpush.msra.mxu0 %v30
  %66 = vmatpush.msra.mxu0 %v29
  %67 = vmatmul.f32.gmra.mxu0 %v43
  %v68 = vpop.f32.mrf.mxu0
  %v69 = vadd.f32 %v39, %v68
  %70 = vmatmul.f32.gmra.mxu0 %v46
  %v71 = vpop.f32.mrf.mxu0
  %v72 = vadd.f32 %v39, %v71
  %73 = vmatmul.f32.gmra.mxu0 %v49
  %v74 = vpop.f32.mrf.mxu0
  %v75 = vadd.f32 %v39, %v74
  %76 = vdwg.mxu0
  %vm77 = vcmp.ge.f32.partialorder %v69, 0.0
  %vm78 = vcmp.ge.f32.partialorder %v72, 0.0
  %vm79 = vcmp.ge.f32.partialorder %v75, 0.0
  %v80 = vmul.f32 %v69, 0.01
  %v81 = vmul.f32 %v72, 0.01
  %v82 = vmul.f32 %v75, 0.01
  %v83 = vsel %vm77, %v69, %v80
  %v84 = vsel %vm78, %v72, %v81
  %v85 = vsel %vm79, %v75, %v82
  %v86 = vld [vmem:[%s3] sm:$0xff]
  %v87 = vld [vmem:[%s3 + $0x8] sm:$0xff]
  %v88 = vld [vmem:[%s3 + $0x10] sm:$0xff]
  %v89 = vld [vmem:[%s3 + $0x18] sm:$0xff]
  %v90 = vld [vmem:[%s4] sm:$0x1]
  %v92 = vperm.slane %v90, 0
  %vm94 = vcmask 261120
  %v96 = vsel %vm94, %v83, 0
  %v99 = vsel %vm94, %v84, 0
  %v102 = vsel %vm94, %v85, 0
  %104 = vmatpush.msra.mxu0 0.0
  %105 = vmatpush.msra.mxu0 0.0
  %106 = vmatpush.msra.mxu0 0.0
  %107 = vmatpush.msra.mxu0 0.0
  %108 = vmatpush.msra.mxu0 0.0
  %109 = vmatpush.msra.mxu0 0.0
  %110 = vmatpush.msra.mxu0 0.0
  %111 = vmatpush.msra.mxu0 0.0
  %112 = vmatpush.msra.mxu0 0.0
  %113 = vmatpush.msra.mxu0 0.0
  %114 = vmatpush.msra.mxu0 0.0
  %115 = vmatpush.msra.mxu0 0.0
  %116 = vmatpush.msra.mxu0 %v89
  %117 = vmatpush.msra.mxu0 %v88
  %118 = vmatpush.msra.mxu0 %v87
  %119 = vmatpush.msra.mxu0 %v86
  %120 = vmatmul.f32.gmra.mxu0 %v96
  %v121 = vpop.f32.mrf.mxu0
  %v122 = vadd.f32 %v92, %v121
  %123 = vmatmul.f32.gmra.mxu0 %v99
  %v124 = vpop.f32.mrf.mxu0
  %v125 = vadd.f32 %v92, %v124
  %126 = vmatmul.f32.gmra.mxu0 %v102
  %v127 = vpop.f32.mrf.mxu0
  %v128 = vadd.f32 %v92, %v127
  %129 = vdwg.mxu0
  %vm130 = vcmp.ge.f32.partialorder %v122, 0.0
  %vm131 = vcmp.ge.f32.partialorder %v125, 0.0
  %vm132 = vcmp.ge.f32.partialorder %v128, 0.0
  %v133 = vmul.f32 %v122, 0.01
  %v134 = vmul.f32 %v125, 0.01
  %v135 = vmul.f32 %v128, 0.01
  %v136 = vsel %vm130, %v122, %v133
  %v137 = vsel %vm131, %v125, %v134
  %v138 = vsel %vm132, %v128, %v135
  %v139 = vld [vmem:[%s5] sm:$0xff]
  %v140 = vld [vmem:[%s5 + $0x8] sm:$0xff]
  %v141 = vld [vmem:[%s5 + $0x10] sm:$0xff]
  %v142 = vld [vmem:[%s5 + $0x18] sm:$0xff]
  %v143 = vld [vmem:[%s6] sm:$0x1]
  %v145 = vperm.slane %v143, 0
  %v148 = vsel %vm94, %v136, 0
  %v151 = vsel %vm94, %v137, 0
  %v154 = vsel %vm94, %v138, 0
  %156 = vmatpush.msra.mxu0 0.0
  %157 = vmatpush.msra.mxu0 0.0
  %158 = vmatpush.msra.mxu0 0.0
  %159 = vmatpush.msra.mxu0 0.0
  %160 = vmatpush.msra.mxu0 0.0
  %161 = vmatpush.msra.mxu0 0.0
  %162 = vmatpush.msra.mxu0 0.0
  %163 = vmatpush.msra.mxu0 0.0
  %164 = vmatpush.msra.mxu0 0.0
  %165 = vmatpush.msra.mxu0 0.0
  %166 = vmatpush.msra.mxu0 0.0
  %167 = vmatpush.msra.mxu0 0.0
  %168 = vmatpush.msra.mxu0 %v142
  %169 = vmatpush.msra.mxu0 %v141
  %170 = vmatpush.msra.mxu0 %v140
  %171 = vmatpush.msra.mxu0 %v139
  %172 = vmatmul.f32.gmra.mxu0 %v148
  %v173 = vpop.f32.mrf.mxu0
  %v174 = vadd.f32 %v145, %v173
  %175 = vmatmul.f32.gmra.mxu0 %v151
  %v176 = vpop.f32.mrf.mxu0
  %v177 = vadd.f32 %v145, %v176
  %178 = vmatmul.f32.gmra.mxu0 %v154
  %v179 = vpop.f32.mrf.mxu0
  %v180 = vadd.f32 %v145, %v179
  %181 = vdwg.mxu0
  %vm182 = vcmask 15360
  %183 = vst.msk [vmem:[%s7] sm:$0xff] %vm182, %v174
  %184 = vst.msk [vmem:[%s7 + $0x8] sm:$0xff] %vm182, %v177
  %185 = vst.msk [vmem:[%s7 + $0x10] sm:$0xff] %vm182, %v180
  // Predicated region
  $region30: #{graphing_model_forward.1} parent=0 // pred_check
    _
  $region31: #{graphing_model_forward.1} parent=0 // pred_check_branch
    %187 = sbr.rel (0) target = $region33
  $region32: #{graphing_model_forward.1} parent=0 // pred_region
    _
  $region33: #{graphing_model_forward.1} parent=0 // pred_fallthru
    _
  // Predicated region
  $region34: #{graphing_model_forward.1} parent=0 // pred_check
    _
  $region35: #{graphing_model_forward.1} parent=0 // pred_check_branch
    %189 = sbr.rel (0) target = $region37
  $region36: #{graphing_model_forward.1} parent=0 // pred_region
    _
  $region37: #{graphing_model_forward.1} parent=0 // pred_fallthru
    _

</llo_original>
